<compile_context>
chip_gen: v6e
topology: v6e:2x2x1
jax: 0.10.0
libtpu: 0.0.40
codegen_flags: <defaults>
</compile_context>

<pallas_src>
import jax
import jax.numpy as jnp
from jax.experimental import pallas as pl
from jax.experimental.pallas import tpu as pltpu


_LANE = 128            # pad class dim to a full lane width -> unmasked vector stores
_ROW_ALIGN = 16        # sublane alignment safe for bf16 (16,128) packing
_MAX_TB = 2048         # max rows per grid step (512-2K row tiles ~85% of HBM roofline)
_SPLIT_ROWS = 1024     # above this, use >=2 grid steps so "parallel" uses both TCs (v7x)
_MIN_PALLAS_ROWS = 256  # below this, plain XLA beats pallas_call launch + DMA setup


def _round_up(n, m):
    return ((n + m - 1) // m) * m


def _fused_linear_kernel(x_ref, w_ref, b_ref, out_ref):
    # One MXU matmul per tile: [tb, ninp]bf16 @ [ninp, C_pad]bf16 -> f32 acc, then + bias.
    acc = jnp.dot(x_ref[...], w_ref[...], preferred_element_type=jnp.float32)
    out_ref[...] = (acc + b_ref[...]).astype(out_ref.dtype)


def init_params(key, ninp, nhid, classes):
    """Per-layer params matching nn.Linear init, stored transposed as [in, out]."""
    ks = jax.random.split(key, 6)

    def lin(kw, kb, fan_in, fan_out):
        bound = 1.0 / jnp.sqrt(fan_in)
        w = jax.random.uniform(kw, (fan_in, fan_out), jnp.float32, -bound, bound)
        b = jax.random.uniform(kb, (1, fan_out), jnp.float32, -bound, bound)
        return w, b

    w1, b1 = lin(ks[0], ks[1], ninp, nhid)
    w2, b2 = lin(ks[2], ks[3], nhid, nhid // 2)
    w3, b3 = lin(ks[4], ks[5], nhid // 2, classes)
    return {"w1": w1, "b1": b1, "w2": w2, "b2": b2, "w3": w3, "b3": b3}


def fuse_and_pad_params(raw, classes):
    """Collapse the 3 affine layers into one; pad class dim to 128; bf16 copies for MXU.

    Done once in plain JAX at setup time (not per forward call).
    """
    w1, b1 = raw["w1"], raw["b1"]
    w2, b2 = raw["w2"], raw["b2"]
    w3, b3 = raw["w3"], raw["b3"]
    w_fused = w1 @ w2 @ w3                                 # [ninp, classes], f32
    b_fused = b1 @ w2 @ w3 + b2 @ w3 + b3                  # [1, classes], f32

    c_pad = _round_up(max(classes, _LANE), _LANE)
    pad_c = c_pad - classes
    w_pad = jnp.pad(w_fused, ((0, 0), (0, pad_c)))         # lane-dense output columns
    b_pad = jnp.pad(b_fused, ((0, 0), (0, pad_c)))

    return {
        "classes": classes,
        # f32 unpadded copies: XLA fast path for tiny batches (exact fused affine)
        "w_fused_f32": w_fused,
        "b_fused_f32": b_fused,
        # bf16 padded copies: Pallas path (f32 accumulate inside the kernel)
        "w_pad_bf16": w_pad.astype(jnp.bfloat16),
        "b_pad_f32": b_pad,
    }


def _choose_batch_tiling(B):
    """Return (total_padded_rows, rows_per_tile, num_grid_steps)."""
    b_pad = _round_up(max(B, _ROW_ALIGN), _ROW_ALIGN)
    if b_pad <= _SPLIT_ROWS:
        # Single step: tile == whole (padded) batch; grid=(1,).
        return b_pad, b_pad, 1
    # >= 2 steps (even count balances both v7x TensorCores); tb capped at _MAX_TB and
    # chosen from B itself so row-padding waste stays at <= a few sublanes.
    n_steps = max(2, pl.cdiv(b_pad, _MAX_TB))
    if n_steps % 2:
        n_steps += 1
    tb = _round_up(pl.cdiv(b_pad, n_steps), _ROW_ALIGN)
    return n_steps * tb, tb, n_steps


def time_series_model_forward(x, params, *, force_pallas=False, strip_padding=True):
    """x: [B, ninp] float32.  params: output of fuse_and_pad_params.

    Returns [B, classes] f32 (or the padded lane-dense slab if strip_padding=False).
    """
    classes = params["classes"]
    B, ninp = x.shape

    if not force_pallas and B < _MIN_PALLAS_ROWS:
        # Tiny batch: fixed pallas_call + DMA setup dwarfs the ~B*ninp*classes MACs.
        return x @ params["w_fused_f32"] + params["b_fused_f32"]

    w = params["w_pad_bf16"]       # [ninp, C_pad] bf16, VMEM-resident across the grid
    b = params["b_pad_f32"]        # [1, C_pad]  f32
    c_pad = w.shape[1]

    total_rows, tb, n_steps = _choose_batch_tiling(B)
    xb = x.astype(jnp.bfloat16)    # halve the input byte stream; accumulate stays f32
    if total_rows != B:
        xb = jnp.pad(xb, ((0, total_rows - B), (0, 0)))

    out = pl.pallas_call(
        _fused_linear_kernel,
        out_shape=jax.ShapeDtypeStruct((total_rows, c_pad), jnp.float32),
        grid_spec=pltpu.PrefetchScalarGridSpec(
            num_scalar_prefetch=0,
            grid=(n_steps,),
            in_specs=[
                # Batch-tiled input: double-buffered by the BlockSpec pipeline.
                pl.BlockSpec((tb, ninp), lambda i: (i, 0)),
                # Grid-invariant fused weights/bias: constant index_map means Pallas skips
                # the re-DMA between steps; the redundant second buffer is only ~8 KiB, so
                # an explicit pl.Buffered(1) is omitted to keep lowering simple.
                pl.BlockSpec((ninp, c_pad), lambda i: (0, 0)),
                pl.BlockSpec((1, c_pad), lambda i: (0, 0)),
            ],
            out_specs=pl.BlockSpec((tb, c_pad), lambda i: (i, 0)),
        ),
        compiler_params=pltpu.CompilerParams(
            dimension_semantics=("parallel",),   # batch tiles shard across TCs on v7x
            vmem_limit_bytes=32 * 1024 * 1024,   # tb<=2048 => <3 MiB live; safe everywhere
        ),
    )(xb, w, b)

    if strip_padding:
        # NOTE: for large B, prefer strip_padding=False (keep the lane-dense padded slab,
        # mask rows >= B / cols >= classes downstream) to avoid an extra full-output pass.
        out = out[:B, :classes]
    return out


if __name__ == "__main__":
    key = jax.random.PRNGKey(0)
    k_x1, k_x2, k_p = jax.random.split(key, 3)

    ninp, nhid, classes = 32, 64, 10
    raw = init_params(k_p, ninp, nhid, classes)
    params = fuse_and_pad_params(raw, classes)

    def reference(x):
        h = x @ raw["w1"] + raw["b1"]      # dropout is identity in eval mode
        h = h @ raw["w2"] + raw["b2"]
        return h @ raw["w3"] + raw["b3"]

    # --- small batch, forced Pallas path (single grid step) ---
    B_small = 8
    x_small = jax.random.normal(k_x1, (B_small, ninp), dtype=jnp.float32)
    out_small = jax.block_until_ready(
        time_series_model_forward(x_small, params, force_pallas=True))
    assert out_small.shape == (B_small, classes)
    assert jnp.allclose(out_small, reference(x_small), atol=3e-2, rtol=3e-2)  # bf16 inputs

    # --- small batch, default dispatch (XLA fast path, exact f32 fused affine) ---
    out_fast = jax.block_until_ready(time_series_model_forward(x_small, params))
    assert out_fast.shape == (B_small, classes)
    assert jnp.allclose(out_fast, reference(x_small), atol=1e-4, rtol=1e-4)

    # --- larger batch: multi-step grid (2 even tiles, minimal row padding) ---
    B_big = 2050
    x_big = jax.random.normal(k_x2, (B_big, ninp), dtype=jnp.float32)
    out_big = jax.block_until_ready(time_series_model_forward(x_big, params))
    assert out_big.shape == (B_big, classes)
    assert jnp.allclose(out_big, reference(x_big), atol=3e-2, rtol=3e-2)

    print("KERNEL_OK")
</pallas_src>

<mosaic_0001>
module attributes {stable_mosaic.version = 11 : i64} {
  func.func @_fused_linear_kernel(%arg0: i32, %arg1: memref<16x32xbf16, #tpu.memory_space<vmem>>, %arg2: memref<32x128xbf16, #tpu.memory_space<vmem>>, %arg3: memref<1x128xf32, #tpu.memory_space<vmem>>, %arg4: memref<16x128xf32, #tpu.memory_space<vmem>>) attributes {dimension_semantics = [#tpu.dimension_semantics<parallel>], iteration_bounds = array<i64: 1>, scalar_prefetch = 0 : i64, scratch_operands = 0 : i64, tpu.core_type = #tpu.core_type<tc>, window_params = [{transform_indices = @transform_0, window_bounds = array<i64: 16, 32>}, {pipeline_mode = #tpu.pipeline_mode<synchronous>, transform_indices = @transform_1, window_bounds = array<i64: 32, 128>}, {pipeline_mode = #tpu.pipeline_mode<synchronous>, transform_indices = @transform_2, window_bounds = array<i64: 1, 128>}, {transform_indices = @transform_3, window_bounds = array<i64: 16, 128>}]} {
    %c0 = arith.constant 0 : index
    %c0_0 = arith.constant 0 : index
    %0 = vector.load %arg1[%c0, %c0_0] : memref<16x32xbf16, #tpu.memory_space<vmem>>, vector<16x32xbf16>
    %c0_1 = arith.constant 0 : index
    %c0_2 = arith.constant 0 : index
    %1 = vector.load %arg2[%c0_1, %c0_2] : memref<32x128xbf16, #tpu.memory_space<vmem>>, vector<32x128xbf16>
    %cst = arith.constant dense<0.000000e+00> : vector<16x128xf32>
    %2 = tpu.matmul %0, %1, %cst {dimension_numbers = #tpu.dot_dimension_numbers<[1], [0], [0], [1], [0, 0, 1, 1], [], []>} : vector<16x32xbf16>, vector<32x128xbf16>, vector<16x128xf32> -> vector<16x128xf32>
    %c0_3 = arith.constant 0 : index
    %c0_4 = arith.constant 0 : index
    %3 = vector.load %arg3[%c0_3, %c0_4] : memref<1x128xf32, #tpu.memory_space<vmem>>, vector<1x128xf32>
    %4 = vector.broadcast %3 : vector<1x128xf32> to vector<16x128xf32>
    %5 = arith.addf %2, %4 : vector<16x128xf32>
    %c0_5 = arith.constant 0 : index
    %c0_6 = arith.constant 0 : index
    %6 = vector.load %arg4[%c0_5, %c0_6] : memref<16x128xf32, #tpu.memory_space<vmem>>, vector<16x128xf32>
    tpu.vector_store %arg4[%c0_5, %c0_6], %5 {strides = array<i32>} : memref<16x128xf32, #tpu.memory_space<vmem>>, vector<16x128xf32>,
    return
  }
  func.func @transform_0(%arg0: i32) -> (i32, i32) {
    %c0_i32 = arith.constant 0 : i32
    %c0_i32_0 = arith.constant 0 : i32
    return %arg0, %c0_i32 : i32, i32
  }
  func.func @transform_1(%arg0: i32) -> (i32, i32) {
    %c0_i32 = arith.constant 0 : i32
    %c0_i32_0 = arith.constant 0 : i32
    %c0_i32_1 = arith.constant 0 : i32
    return %c0_i32, %c0_i32_0 : i32, i32
  }
  func.func @transform_2(%arg0: i32) -> (i32, i32) {
    %c0_i32 = arith.constant 0 : i32
    %c0_i32_0 = arith.constant 0 : i32
    %c0_i32_1 = arith.constant 0 : i32
    return %c0_i32, %c0_i32_0 : i32, i32
  }
  func.func @transform_3(%arg0: i32) -> (i32, i32) {
    %c0_i32 = arith.constant 0 : i32
    %c0_i32_0 = arith.constant 0 : i32
    return %arg0, %c0_i32 : i32, i32
  }
}

</mosaic_0001>

<llo_original>
// kernel: tpu_custom_call.1
$region0: #{tpu_custom_call.1}
  #allocation0 [shape = 'u32[]', space=smem, size = 0x4, offset = 0x4, fixed_abs, tag = 'smem constant byte address 0x4 - core index']
  #allocation1 [shape = 'u32[144,128]{1,0:T(1,128)}', space=vmem, size = 0x12000, scoped, tag = 'internal scratch']
  %s0 = inlined_call_operand.hbm [shape: bf16[16,32], index: 0, kind: input, shape index: {}]
  %s1 = inlined_call_operand.hbm [shape: bf16[32,128], index: 1, kind: input, shape index: {}]
  %s2 = inlined_call_operand.vmem [shape: f32[1,128], index: 2, kind: input, shape index: {}]
  %s3 = inlined_call_operand.hbm [shape: f32[16,128], index: 3, kind: output, shape index: {}]
  %s4 = sld [smem:[#allocation0]]
  $region30: #{tpu_custom_call.1} parent=0
    _
  %s6 = ssub.s32 1, %s4
  %s7 = scalar_select 0, %s6, %s4
  $region1: #{tpu_custom_call.1} parent=0
    #allocation2 [shape = 'u8[4096]{0}', space=vmem, size = 0x1000, scoped, tag = 'input window, operand 0, single buffered']
    #allocation3 [shape = 's32[1]{0}', space=sflag, size = 0x4, scoped, tag = 'scoped memory for tpu_custom_call.1']
    #allocation4 [shape = 's32[1]{0}', space=sflag, size = 0x4, scoped, tag = 'scoped memory for tpu_custom_call.1']
    #allocation5 [shape = 'u8[8192]{0}', space=vmem, size = 0x2000, scoped, tag = 'input window, operand 1, single buffered']
    #allocation6 [shape = 's32[1]{0}', space=sflag, size = 0x4, scoped, tag = 'scoped memory for tpu_custom_call.1']
    #allocation7 [shape = 'u8[8192]{0}', space=vmem, size = 0x2000, scoped, tag = 'output window, operand 0, single buffered']
    %8 = vsyncpa [#allocation3], 0
    %9 = vsyncpa [#allocation6], 0
    %10 = vsyncpa [#allocation4], 0
    // Predicated region
    $region2: #{tpu_custom_call.1} parent=1 // pred_check
      _
    $region3: #{tpu_custom_call.1} parent=1 // pred_check_branch
      %12 = sbr.rel (0) target = $region5
    $region4: #{tpu_custom_call.1} parent=1 // pred_region
      %s14 = ssub.s32 128, 128
      %15 = vsyncadd [#allocation3], %s14
      %s16 = sshll.u32 [#allocation2], 4
      %s17 = int_to_ptr.vmem [resolvable:$true] %s16
      %22 = dma.hbm_to_vmem [thread:$0]  %s0, 128, %s17, [#allocation3], 64, 64, 4
    $region5: #{tpu_custom_call.1} parent=1 // pred_fallthru
      _
    // Predicated region
    $region6: #{tpu_custom_call.1} parent=1 // pred_check
      _
    $region7: #{tpu_custom_call.1} parent=1 // pred_check_branch
      %24 = sbr.rel (0) target = $region9
    $region8: #{tpu_custom_call.1} parent=1 // pred_region
      %s26 = ssub.s32 256, 256
      %27 = vsyncadd [#allocation6], %s26
      %s28 = sshll.u32 [#allocation5], 4
      %s29 = int_to_ptr.vmem [resolvable:$true] %s28
      %34 = dma.hbm_to_vmem [thread:$0]  %s1, 256, %s29, [#allocation6], 64, 64, 4
    $region9: #{tpu_custom_call.1} parent=1 // pred_fallthru
      _
    // Predicated region
    $region10: #{tpu_custom_call.1} parent=1 // pred_check
      _
    $region11: #{tpu_custom_call.1} parent=1 // pred_check_branch
      %36 = sbr.rel (0) target = $region13
    $region12: #{tpu_custom_call.1} parent=1 // pred_region
      _
    $region13: #{tpu_custom_call.1} parent=1 // pred_fallthru
      _
    // Predicated region
    $region14: #{tpu_custom_call.1} parent=1 // pred_check
      _
    $region15: #{tpu_custom_call.1} parent=1 // pred_check_branch
      %38 = sbr.rel (0) target = $region17
    $region16: #{tpu_custom_call.1} parent=1 // pred_region
      %39 = dma.done [#allocation3], 128
    $region17: #{tpu_custom_call.1} parent=1 // pred_fallthru
      _
    // Predicated region
    $region18: #{tpu_custom_call.1} parent=1 // pred_check
      _
    $region19: #{tpu_custom_call.1} parent=1 // pred_check_branch
      %41 = sbr.rel (0) target = $region21
    $region20: #{tpu_custom_call.1} parent=1 // pred_region
      %42 = dma.done [#allocation6], 256
    $region21: #{tpu_custom_call.1} parent=1 // pred_fallthru
      _
    %v44 = vld [vmem:[#allocation2] sm:$0xf]
    %v45 = vld [vmem:[#allocation2 + $0x4] sm:$0xf]
    %v46 = vld [vmem:[#allocation5] sm:$0xf]
    %v47 = vld [vmem:[#allocation5 + $0x4] sm:$0xf]
    %v48 = vld [vmem:[#allocation5 + $0x8] sm:$0xf]
    %v49 = vld [vmem:[#allocation5 + $0xc] sm:$0xf]
    %v50 = vld [vmem:[%s2] sm:$0x1]
    %v52 = vlaneseq
    %v53 = vshrl.u32 %v52, 7
    %v54 = vsub.s32 0, %v53
    %v55 = vrot.slane %v50, %v54
    %v59 = vunpack.c.l.b16 %v44
    %v60 = vunpack.c.l.b16 %v45
    %v61 = vpack.c.b16 %v60, %v59
    %v66 = vunpack.c.l.b16 %v46
    %v67 = vunpack.c.l.b16 %v47
    %v68 = vunpack.c.l.b16 %v48
    %v69 = vunpack.c.l.b16 %v49
    %v70 = vpack.c.b16 %v67, %v66
    %v71 = vpack.c.b16 %v69, %v68
    %vm74 = vcmask 261120
    %v76 = vsel %vm74, %v61, 0
    %78 = vmatprep.subr.bf16.mxu0 0
    %79 = vmatpush1.bf16.msra.mxu0 0
    %80 = vmatprep.subr.bf16.mxu0 0
    %81 = vmatpush1.bf16.msra.mxu0 0
    %82 = vmatprep.subr.bf16.mxu0 0
    %83 = vmatpush1.bf16.msra.mxu0 0
    %84 = vmatprep.subr.bf16.mxu0 0
    %85 = vmatpush1.bf16.msra.mxu0 0
    %86 = vmatprep.subr.bf16.mxu0 0
    %87 = vmatpush1.bf16.msra.mxu0 0
    %88 = vmatprep.subr.bf16.mxu0 0
    %89 = vmatpush1.bf16.msra.mxu0 0
    %90 = vmatprep.subr.bf16.mxu0 0
    %91 = vmatpush1.bf16.msra.mxu0 %v71
    %92 = vmatprep.subr.bf16.mxu0 0
    %93 = vmatpush1.bf16.msra.mxu0 %v70
    %94 = vmatprep.subr.bf16.mxu0 0
    %95 = vmatpush2.bf16.msra.mxu0 0
    %96 = vmatprep.subr.bf16.mxu0 0
    %97 = vmatpush2.bf16.msra.mxu0 0
    %98 = vmatprep.subr.bf16.mxu0 0
    %99 = vmatpush2.bf16.msra.mxu0 0
    %100 = vmatprep.subr.bf16.mxu0 0
    %101 = vmatpush2.bf16.msra.mxu0 0
    %102 = vmatprep.subr.bf16.mxu0 0
    %103 = vmatpush2.bf16.msra.mxu0 0
    %104 = vmatprep.subr.bf16.mxu0 0
    %105 = vmatpush2.bf16.msra.mxu0 0
    %106 = vmatprep.subr.bf16.mxu0 0
    %107 = vmatpush2.bf16.msra.mxu0 0
    %108 = vmatprep.subr.bf16.mxu0 0
    %109 = vmatpush2.bf16.msra.mxu0 0
    %110 = vmatprep.mubr.bf16.mxu0 0
    %111 = vmatmul.mubr.bf16.gmra.mxu0 %v76
    %v112 = vpop.f32.mrf.mxu0
    %v113 = vadd.f32 %v55, %v112
    %v114 = vpop.f32.mrf.mxu0
    %v115 = vpop.f32.mrf.mxu0
    %v116 = vadd.f32 %v55, %v115
    %v117 = vpop.f32.mrf.mxu0
    %118 = vdwg.mxu0
    %119 = vst [vmem:[#allocation7] sm:$0xff] %v113
    %120 = vst [vmem:[#allocation7 + $0x8] sm:$0xff] %v116
    // Predicated region
    $region22: #{tpu_custom_call.1} parent=1 // pred_check
      _
    $region23: #{tpu_custom_call.1} parent=1 // pred_check_branch
      %122 = sbr.rel (0) target = $region25
    $region24: #{tpu_custom_call.1} parent=1 // pred_region
      %s124 = ssub.s32 256, 256
      %125 = vsyncadd [#allocation4], %s124
      %s126 = sshll.u32 [#allocation7], 4
      %s127 = int_to_ptr.vmem [resolvable:$true] %s126
      %132 = dma.vmem_to_hbm [thread:$0]  %s127, 256, %s3, [#allocation4], 128, 128, 8
    $region25: #{tpu_custom_call.1} parent=1 // pred_fallthru
      _
    // Predicated region
    $region26: #{tpu_custom_call.1} parent=1 // pred_check
      _
    $region27: #{tpu_custom_call.1} parent=1 // pred_check_branch
      %134 = sbr.rel (0) target = $region29
    $region28: #{tpu_custom_call.1} parent=1 // pred_region
      %135 = dma.done [#allocation4], 256
    $region29: #{tpu_custom_call.1} parent=1 // pred_fallthru
      _
    %136 = vsyncpa [#allocation3], 1
    %137 = vsyncpa [#allocation6], 1
    %138 = vsyncpa [#allocation4], 1

</llo_original>
